<compile_context>
chip_gen: v7x
topology: tpu7x:2x2x1
jax: 0.10.0
libtpu: 0.0.40
codegen_flags: <defaults>
</compile_context>

<pallas_src>
import functools

import jax
import jax.numpy as jnp
from jax.experimental import pallas as pl
from jax.experimental.pallas import tpu as pltpu


def _round_up(n, m):
    return ((n + m - 1) // m) * m


def _cdiv(a, b):
    return (a + b - 1) // b


def _leaky_relu(h, negative_slope=0.2):
    # Elementwise math kept in f32 on the VPU (safe on v5e/v6e/v7x).
    return jnp.where(h >= 0, h, negative_slope * h)


def stats_net_kernel(xz_ref, w1_ref, b1_ref, w2_ref, b2_ref, w3_ref, b3_ref,
                     w4_ref, b4_ref, o_ref, *, matmul_dtype):
    """One batch tile of the 4-layer MLP, batch on the lane axis throughout.

    xz_ref: (2+z_dim, tile)   w*_ref: PyTorch-layout (out, in) weights
    b1..b3: (dim, 1) lane-broadcast biases    b4: (1,1) scalar in SMEM
    o_ref:  (1, 1, tile) lane-dense output row.
    """
    xz = xz_ref[...].astype(matmul_dtype)                         # (K0, tile)

    # Layer 1: single fused K=2+z_dim matmul (concat already done upstream).
    h = jnp.dot(w1_ref[...], xz,
                preferred_element_type=jnp.float32) + b1_ref[...]  # (dim, tile)
    h = _leaky_relu(h)

    h = jnp.dot(w2_ref[...], h.astype(matmul_dtype),
                preferred_element_type=jnp.float32) + b2_ref[...]
    h = _leaky_relu(h)

    h = jnp.dot(w3_ref[...], h.astype(matmul_dtype),
                preferred_element_type=jnp.float32) + b3_ref[...]
    h = _leaky_relu(h)

    # Layer 4: (1, dim) @ (dim, tile) -> (1, tile); batch on lanes, so the
    # store below is a full unmasked vector store.
    y = jnp.dot(w4_ref[...], h.astype(matmul_dtype),
                preferred_element_type=jnp.float32) + b4_ref[0, 0]

    o_ref[...] = y[None].astype(o_ref.dtype)                      # (1, 1, tile)


def statistics_network_forward(x, z, params, *, batch_tile=4096,
                               min_grid_steps=2,
                               matmul_dtype=jnp.bfloat16):
    """Pallas forward of StatisticsNetwork.

    x: [B, 2], z: [B, z_dim]  ->  [B]   (== main(cat([x, z], -1)).squeeze(-1))
    """
    w1, b1, w2, b2, w3, b3, w4, b4 = params
    B = x.shape[0]
    K0 = x.shape[1] + z.shape[1]
    dim = w1.shape[0]
    assert w1.shape == (dim, K0) and w4.shape == (1, dim)
    assert batch_tile % 128 == 0

    # --- batch tile choice -------------------------------------------------
    # Big tiles amortize the ~0.35us/step grid overhead (the kernel is nowhere
    # near MXU/HBM bound at dim=32), but keep >= min_grid_steps grid steps
    # when possible so the "parallel" axis can shard across v7x's two
    # TensorCores.  Tiles are always a multiple of 128 lanes.
    Bp128 = _round_up(B, 128)
    tile = min(batch_tile, Bp128)
    if Bp128 // tile < min_grid_steps:
        tile = max(128, _round_up(_cdiv(Bp128, min_grid_steps), 128))
    Bp = _round_up(B, tile)
    num_tiles = Bp // tile

    # Concat + transpose ONCE in the wrapper: lane-dense (2+z_dim, Bp) input,
    # so every per-tile DMA is a contiguous full-lane block.
    xz_t = jnp.concatenate([x, z], axis=-1).T
    if Bp != B:
        xz_t = jnp.pad(xz_t, ((0, 0), (0, Bp - B)))

    # MXU operands in matmul_dtype (bf16 fast path on v6e/v7x; pass
    # matmul_dtype=float32 on v5e).  Biases stay f32 for the VPU.
    w1_c = w1.astype(matmul_dtype)
    w2_c = w2.astype(matmul_dtype)
    w3_c = w3.astype(matmul_dtype)
    w4_c = w4.astype(matmul_dtype)

    def const_spec(a):
        # Constant operand: same block every grid step (not re-DMA'd per step).
        return pl.BlockSpec(a.shape, lambda i: (0,) * a.ndim)

    in_specs = [
        pl.BlockSpec((K0, tile), lambda i: (0, i)),               # xz^T tile
        const_spec(w1_c), const_spec(b1),
        const_spec(w2_c), const_spec(b2),
        const_spec(w3_c), const_spec(b3),
        const_spec(w4_c),
        pl.BlockSpec(memory_space=pltpu.MemorySpace.SMEM),        # scalar b4
    ]
    # Lane-dense output: one (1, tile) row per grid step, batch on lanes.
    out_spec = pl.BlockSpec((1, 1, tile), lambda i: (i, 0, 0))

    out = pl.pallas_call(
        functools.partial(stats_net_kernel, matmul_dtype=matmul_dtype),
        out_shape=jax.ShapeDtypeStruct((num_tiles, 1, tile), jnp.float32),
        grid_spec=pltpu.PrefetchScalarGridSpec(
            num_scalar_prefetch=0,
            grid=(num_tiles,),
            in_specs=in_specs,
            out_specs=out_spec,
        ),
        # "parallel" batch axis lets Mosaic shard grid steps across the two
        # TensorCores on v7x.  Lane-dense layout keeps VMEM tiny (<~2 MB at
        # tile=4096), so no vmem_limit_bytes override is needed.
        compiler_params=pltpu.CompilerParams(
            dimension_semantics=("parallel",),
        ),
    )(xz_t, w1_c, b1, w2_c, b2, w3_c, b3, w4_c, b4)

    # Padded columns compute leaky_relu(b) garbage; sliced off here (cheaper
    # than per-column masking inside the kernel).
    return out.reshape(-1)[:B]                                    # .squeeze(-1)


def init_params(key, z_dim, dim):
    """PyTorch nn.Linear default init (U[-1/sqrt(fan_in), 1/sqrt(fan_in)]).
    Weights are stored PyTorch-style (out_features, in_features) — exactly the
    layout the transposed (batch-on-lanes) kernel consumes — and biases as
    (out_features, 1)."""
    def linear(k, fan_in, fan_out):
        kw, kb = jax.random.split(k)
        bound = 1.0 / (fan_in ** 0.5)
        w = jax.random.uniform(kw, (fan_out, fan_in), jnp.float32, -bound, bound)
        b = jax.random.uniform(kb, (fan_out, 1), jnp.float32, -bound, bound)
        return w, b

    k1, k2, k3, k4 = jax.random.split(key, 4)
    w1, b1 = linear(k1, 2 + z_dim, dim)
    w2, b2 = linear(k2, dim, dim)
    w3, b3 = linear(k3, dim, dim)
    w4, b4 = linear(k4, dim, 1)
    return (w1, b1, w2, b2, w3, b3, w4, b4)


def reference_forward(x, z, params):
    """Pure-JAX f32 reference matching the PyTorch module."""
    w1, b1, w2, b2, w3, b3, w4, b4 = params
    xz = jnp.concatenate([x, z], axis=-1)
    h = _leaky_relu(xz @ w1.T + b1[:, 0])
    h = _leaky_relu(h @ w2.T + b2[:, 0])
    h = _leaky_relu(h @ w3.T + b3[:, 0])
    return (h @ w4.T + b4[:, 0])[:, 0]


if __name__ == "__main__":
    z_dim = 6       # input features = 2 + 6 = 8
    dim = 32
    batch = 200     # deliberately not a multiple of 128: exercises padding

    key = jax.random.PRNGKey(0)
    kx, kz, kp = jax.random.split(key, 3)
    x = jax.random.normal(kx, (batch, 2), jnp.float32)
    z = jax.random.normal(kz, (batch, z_dim), jnp.float32)
    params = init_params(kp, z_dim, dim)

    ref = reference_forward(x, z, params)

    # 1) exact-precision run (f32 MXU operands; the recommended v5e path):
    #    tight check vs. reference.
    fwd_f32 = jax.jit(functools.partial(statistics_network_forward,
                                        matmul_dtype=jnp.float32))
    y32 = fwd_f32(x, z, params)
    jax.block_until_ready(y32)
    assert y32.shape == (batch,), y32.shape
    assert jnp.allclose(y32, ref, atol=1e-4, rtol=1e-4), "f32 mismatch vs reference"

    # 2) default bf16-MXU run (v6e/v7x fast path): loose check vs. f32 ref.
    fwd_bf16 = jax.jit(statistics_network_forward)
    y16 = fwd_bf16(x, z, params)
    jax.block_until_ready(y16)
    assert y16.shape == (batch,), y16.shape
    assert jnp.allclose(y16, ref, atol=5e-2), "bf16 mismatch vs reference"

    print("KERNEL_OK")
</pallas_src>

<mosaic_0001>
module attributes {stable_mosaic.version = 11 : i64} {
  func.func @stats_net_kernel(%arg0: i32, %arg1: memref<8x128xf32, #tpu.memory_space<vmem>>, %arg2: memref<32x8xf32, #tpu.memory_space<vmem>>, %arg3: memref<32x1xf32, #tpu.memory_space<vmem>>, %arg4: memref<32x32xf32, #tpu.memory_space<vmem>>, %arg5: memref<32x1xf32, #tpu.memory_space<vmem>>, %arg6: memref<32x32xf32, #tpu.memory_space<vmem>>, %arg7: memref<32x1xf32, #tpu.memory_space<vmem>>, %arg8: memref<1x32xf32, #tpu.memory_space<vmem>>, %arg9: memref<1x1xf32, #tpu.memory_space<smem>>, %arg10: memref<1x1x128xf32, #tpu.memory_space<vmem>>) attributes {dimension_semantics = [#tpu.dimension_semantics<parallel>], iteration_bounds = array<i64: 2>, scalar_prefetch = 0 : i64, scratch_operands = 0 : i64, tpu.core_type = #tpu.core_type<tc>, window_params = [{transform_indices = @transform_0, window_bounds = array<i64: 8, 128>}, {pipeline_mode = #tpu.pipeline_mode<synchronous>, transform_indices = @transform_1, window_bounds = array<i64: 32, 8>}, {pipeline_mode = #tpu.pipeline_mode<synchronous>, transform_indices = @transform_2, window_bounds = array<i64: 32, 1>}, {pipeline_mode = #tpu.pipeline_mode<synchronous>, transform_indices = @transform_3, window_bounds = array<i64: 32, 32>}, {pipeline_mode = #tpu.pipeline_mode<synchronous>, transform_indices = @transform_4, window_bounds = array<i64: 32, 1>}, {pipeline_mode = #tpu.pipeline_mode<synchronous>, transform_indices = @transform_5, window_bounds = array<i64: 32, 32>}, {pipeline_mode = #tpu.pipeline_mode<synchronous>, transform_indices = @transform_6, window_bounds = array<i64: 32, 1>}, {pipeline_mode = #tpu.pipeline_mode<synchronous>, transform_indices = @transform_7, window_bounds = array<i64: 1, 32>}, {transform_indices = @transform_8, window_bounds = array<i64: 1, 1>}, {transform_indices = @transform_9, window_bounds = array<i64: 1, 1, 128>}]} {
    %c0 = arith.constant 0 : index
    %c0_0 = arith.constant 0 : index
    %0 = vector.load %arg1[%c0, %c0_0] : memref<8x128xf32, #tpu.memory_space<vmem>>, vector<8x128xf32>
    %c0_1 = arith.constant 0 : index
    %c0_2 = arith.constant 0 : index
    %1 = vector.load %arg2[%c0_1, %c0_2] : memref<32x8xf32, #tpu.memory_space<vmem>>, vector<32x8xf32>
    %cst = arith.constant dense<0.000000e+00> : vector<32x128xf32>
    %2 = tpu.matmul %1, %0, %cst {dimension_numbers = #tpu.dot_dimension_numbers<[1], [0], [0], [1], [0, 0, 1, 1], [], []>} : vector<32x8xf32>, vector<8x128xf32>, vector<32x128xf32> -> vector<32x128xf32>
    %c0_3 = arith.constant 0 : index
    %c0_4 = arith.constant 0 : index
    %3 = vector.load %arg3[%c0_3, %c0_4] : memref<32x1xf32, #tpu.memory_space<vmem>>, vector<32x1xf32>
    %4 = vector.broadcast %3 : vector<32x1xf32> to vector<32x128xf32>
    %5 = arith.addf %2, %4 : vector<32x128xf32>
    %cst_5 = arith.constant 0.000000e+00 : f32
    %6 = vector.broadcast %cst_5 : f32 to vector<32x128xf32>
    %7 = arith.cmpf oge, %5, %6 : vector<32x128xf32>
    %cst_6 = arith.constant 2.000000e-01 : f32
    %8 = vector.broadcast %cst_6 : f32 to vector<32x128xf32>
    %9 = arith.mulf %8, %5 : vector<32x128xf32>
    %10 = arith.select %7, %5, %9 : vector<32x128xi1>, vector<32x128xf32>
    %c0_7 = arith.constant 0 : index
    %c0_8 = arith.constant 0 : index
    %11 = vector.load %arg4[%c0_7, %c0_8] : memref<32x32xf32, #tpu.memory_space<vmem>>, vector<32x32xf32>
    %cst_9 = arith.constant dense<0.000000e+00> : vector<32x128xf32>
    %12 = tpu.matmul %11, %10, %cst_9 {dimension_numbers = #tpu.dot_dimension_numbers<[1], [0], [0], [1], [0, 0, 1, 1], [], []>} : vector<32x32xf32>, vector<32x128xf32>, vector<32x128xf32> -> vector<32x128xf32>
    %c0_10 = arith.constant 0 : index
    %c0_11 = arith.constant 0 : index
    %13 = vector.load %arg5[%c0_10, %c0_11] : memref<32x1xf32, #tpu.memory_space<vmem>>, vector<32x1xf32>
    %14 = vector.broadcast %13 : vector<32x1xf32> to vector<32x128xf32>
    %15 = arith.addf %12, %14 : vector<32x128xf32>
    %cst_12 = arith.constant 0.000000e+00 : f32
    %16 = vector.broadcast %cst_12 : f32 to vector<32x128xf32>
    %17 = arith.cmpf oge, %15, %16 : vector<32x128xf32>
    %cst_13 = arith.constant 2.000000e-01 : f32
    %18 = vector.broadcast %cst_13 : f32 to vector<32x128xf32>
    %19 = arith.mulf %18, %15 : vector<32x128xf32>
    %20 = arith.select %17, %15, %19 : vector<32x128xi1>, vector<32x128xf32>
    %c0_14 = arith.constant 0 : index
    %c0_15 = arith.constant 0 : index
    %21 = vector.load %arg6[%c0_14, %c0_15] : memref<32x32xf32, #tpu.memory_space<vmem>>, vector<32x32xf32>
    %cst_16 = arith.constant dense<0.000000e+00> : vector<32x128xf32>
    %22 = tpu.matmul %21, %20, %cst_16 {dimension_numbers = #tpu.dot_dimension_numbers<[1], [0], [0], [1], [0, 0, 1, 1], [], []>} : vector<32x32xf32>, vector<32x128xf32>, vector<32x128xf32> -> vector<32x128xf32>
    %c0_17 = arith.constant 0 : index
    %c0_18 = arith.constant 0 : index
    %23 = vector.load %arg7[%c0_17, %c0_18] : memref<32x1xf32, #tpu.memory_space<vmem>>, vector<32x1xf32>
    %24 = vector.broadcast %23 : vector<32x1xf32> to vector<32x128xf32>
    %25 = arith.addf %22, %24 : vector<32x128xf32>
    %cst_19 = arith.constant 0.000000e+00 : f32
    %26 = vector.broadcast %cst_19 : f32 to vector<32x128xf32>
    %27 = arith.cmpf oge, %25, %26 : vector<32x128xf32>
    %cst_20 = arith.constant 2.000000e-01 : f32
    %28 = vector.broadcast %cst_20 : f32 to vector<32x128xf32>
    %29 = arith.mulf %28, %25 : vector<32x128xf32>
    %30 = arith.select %27, %25, %29 : vector<32x128xi1>, vector<32x128xf32>
    %c0_21 = arith.constant 0 : index
    %c0_22 = arith.constant 0 : index
    %31 = vector.load %arg8[%c0_21, %c0_22] : memref<1x32xf32, #tpu.memory_space<vmem>>, vector<1x32xf32>
    %cst_23 = arith.constant dense<0.000000e+00> : vector<1x128xf32>
    %32 = tpu.matmul %31, %30, %cst_23 {dimension_numbers = #tpu.dot_dimension_numbers<[1], [0], [0], [1], [0, 0, 1, 1], [], []>} : vector<1x32xf32>, vector<32x128xf32>, vector<1x128xf32> -> vector<1x128xf32>
    %c0_24 = arith.constant 0 : index
    %c0_25 = arith.constant 0 : index
    %33 = memref.load %arg9[%c0_24, %c0_25] : memref<1x1xf32, #tpu.memory_space<smem>>
    %34 = vector.broadcast %33 : f32 to vector<1x128xf32>
    %35 = arith.addf %32, %34 : vector<1x128xf32>
    %36 = vector.shape_cast %35 : vector<1x128xf32> to vector<1x1x128xf32>
    %c0_26 = arith.constant 0 : index
    %c0_27 = arith.constant 0 : index
    %c0_28 = arith.constant 0 : index
    %37 = vector.load %arg10[%c0_26, %c0_27, %c0_28] : memref<1x1x128xf32, #tpu.memory_space<vmem>>, vector<1x1x128xf32>
    tpu.vector_store %arg10[%c0_26, %c0_27, %c0_28], %36 {strides = array<i32>} : memref<1x1x128xf32, #tpu.memory_space<vmem>>, vector<1x1x128xf32>,
    return
  }
  func.func @transform_0(%arg0: i32) -> (i32, i32) {
    %c0_i32 = arith.constant 0 : i32
    %c0_i32_0 = arith.constant 0 : i32
    return %c0_i32, %arg0 : i32, i32
  }
  func.func @transform_1(%arg0: i32) -> (i32, i32) {
    %c0_i32 = arith.constant 0 : i32
    %c0_i32_0 = arith.constant 0 : i32
    %c0_i32_1 = arith.constant 0 : i32
    return %c0_i32, %c0_i32_0 : i32, i32
  }
  func.func @transform_2(%arg0: i32) -> (i32, i32) {
    %c0_i32 = arith.constant 0 : i32
    %c0_i32_0 = arith.constant 0 : i32
    %c0_i32_1 = arith.constant 0 : i32
    return %c0_i32, %c0_i32_0 : i32, i32
  }
  func.func @transform_3(%arg0: i32) -> (i32, i32) {
    %c0_i32 = arith.constant 0 : i32
    %c0_i32_0 = arith.constant 0 : i32
    %c0_i32_1 = arith.constant 0 : i32
    return %c0_i32, %c0_i32_0 : i32, i32
  }
  func.func @transform_4(%arg0: i32) -> (i32, i32) {
    %c0_i32 = arith.constant 0 : i32
    %c0_i32_0 = arith.constant 0 : i32
    %c0_i32_1 = arith.constant 0 : i32
    return %c0_i32, %c0_i32_0 : i32, i32
  }
  func.func @transform_5(%arg0: i32) -> (i32, i32) {
    %c0_i32 = arith.constant 0 : i32
    %c0_i32_0 = arith.constant 0 : i32
    %c0_i32_1 = arith.constant 0 : i32
    return %c0_i32, %c0_i32_0 : i32, i32
  }
  func.func @transform_6(%arg0: i32) -> (i32, i32) {
    %c0_i32 = arith.constant 0 : i32
    %c0_i32_0 = arith.constant 0 : i32
    %c0_i32_1 = arith.constant 0 : i32
    return %c0_i32, %c0_i32_0 : i32, i32
  }
  func.func @transform_7(%arg0: i32) -> (i32, i32) {
    %c0_i32 = arith.constant 0 : i32
    %c0_i32_0 = arith.constant 0 : i32
    %c0_i32_1 = arith.constant 0 : i32
    return %c0_i32, %c0_i32_0 : i32, i32
  }
  func.func @transform_8(%arg0: i32) -> (i32, i32) {
    %c0_i32 = arith.constant 0 : i32
    %c0_i32_0 = arith.constant 0 : i32
    %c0_i32_1 = arith.constant 0 : i32
    return %c0_i32, %c0_i32_0 : i32, i32
  }
  func.func @transform_9(%arg0: i32) -> (i32, i32, i32) {
    %c0_i32 = arith.constant 0 : i32
    %c0_i32_0 = arith.constant 0 : i32
    %c0_i32_1 = arith.constant 0 : i32
    return %arg0, %c0_i32, %c0_i32_0 : i32, i32, i32
  }
}

</mosaic_0001>

<llo_original>
// kernel: statistics_network_forward.1
$region0: #{statistics_network_forward.1}
  #allocation0 [shape = 'u32[]', space=smem, size = 0x4, offset = 0x4, fixed_abs, tag = 'smem constant byte address 0x4 - core index']
  #allocation1 [shape = 'u32[144,128]{1,0:T(1,128)}', space=vmem, size = 0x12000, scoped, tag = 'internal scratch']
  #allocation2 [shape = 'f32[1,1]{1,0:T(1,128)S(6)}', space=smem, size = 0x200, scoped, tag = 'scoped memory for statistics_network_forward.1']
  %s0 = inlined_call_operand.vmem [shape: f32[8,256], index: 0, kind: input, shape index: {}]
  %s1 = inlined_call_operand.vmem [shape: f32[32,8], index: 1, kind: input, shape index: {}]
  %s2 = inlined_call_operand.vmem [shape: f32[32,1], index: 2, kind: input, shape index: {}]
  %s3 = inlined_call_operand.vmem [shape: f32[32,32], index: 3, kind: input, shape index: {}]
  %s4 = inlined_call_operand.vmem [shape: f32[32,1], index: 4, kind: input, shape index: {}]
  %s5 = inlined_call_operand.vmem [shape: f32[32,32], index: 5, kind: input, shape index: {}]
  %s6 = inlined_call_operand.vmem [shape: f32[32,1], index: 6, kind: input, shape index: {}]
  %s7 = inlined_call_operand.vmem [shape: f32[1,32], index: 7, kind: input, shape index: {}]
  %s8 = inlined_call_operand.<no memory space> [shape: f32[1,1], index: 8, kind: input, shape index: {}]
  %s9 = inlined_call_operand.hbm [shape: f32[2,1,128], index: 9, kind: output, shape index: {}]
  %s10 = sld [smem:[#allocation0]]
  $region69: #{statistics_network_forward.1} parent=0
    _
  %s12 = ssub.s32 1, %s10
  %s13 = scalar_select 0, %s12, %s10
  %14 = sst [smem:[#allocation2]] %s8
  $region1: #{statistics_network_forward.1} parent=0
    #allocation3 [shape = 'u8[1024]{0}', space=vmem, size = 0x400, scoped, tag = 'output window, operand 0']
    #allocation4 [shape = 's32[2]{0}', space=sflag, size = 0x8, scoped, tag = 'scoped memory for statistics_network_forward.1']
    %15 = vsyncpa [#allocation4], 0
    %s16 = scalar_lea.sflag [#allocation4], 1
    %17 = vsyncpa %s16, 0
    loop: start=0, step=1, limit=4
    $region2: #{statistics_network_forward.1} parent=1 // loop_pre_header
      _
    $region3: #{statistics_network_forward.1} parent=1 // loop_header
      %s19 = sphi 0, %s23
      %p20 = scmp.ge.s32.totalorder %s19, 4
      %s29 = sphi 0, %s31
      %s32 = sphi 0, %s29
      %s33 = sphi 0, %s32
      %s49 = sphi 0, %s33
      %s53 = sphi 0, %s53
      %s55 = sphi 0, %s53
      %s56 = sphi 0, %s55
      %s70 = sphi 0, %s56
      %s74 = sphi 0, %s74
      %s76 = sphi 0, %s74
      %s77 = sphi 0, %s76
      %s91 = sphi 0, %s77
      %s95 = sphi 0, %s95
      %s97 = sphi 0, %s95
      %s98 = sphi 0, %s97
      %s112 = sphi 0, %s98
      %s116 = sphi 0, %s116
      %s118 = sphi 0, %s116
      %s119 = sphi 0, %s118
      %s133 = sphi 0, %s119
      %s137 = sphi 0, %s137
      %s139 = sphi 0, %s137
      %s140 = sphi 0, %s139
      %s154 = sphi 0, %s140
      %s158 = sphi 0, %s158
      %s160 = sphi 0, %s158
      %s161 = sphi 0, %s160
      %s175 = sphi 0, %s161
      %s179 = sphi 0, %s179
      %s181 = sphi 0, %s179
      %s182 = sphi 0, %s181
      %s196 = sphi 0, %s182
      %s200 = sphi 0, %s200
      %s202 = sphi 0, %s200
      %s203 = sphi 0, %s202
      %s217 = sphi 0, %s203
      %s223 = sphi 0, %s225
      %s226 = sphi 0, %s223
      %s227 = sphi 0, %s226
      %s243 = sphi 0, %s227
    $region4: #{statistics_network_forward.1} parent=1 // loop_header_branch
      %22 = sbr.rel (%p20) target = $region8
    $region5: #{statistics_network_forward.1} parent=1 // loop_body
      %s24 = ssub.s32 %s19, 1
      %s25 = ssub.s32 %s19, 2
      %s26 = sadd.s32 %s19, 1
      %s27 = ssub.s32 %s19, %s26
      %p28 = scmp.eq.s32.totalorder %s27, 0
      %s30 = sadd.s32 %s29, 1
      %s31 = scalar_select %p28, %s29, %s30
      %p34 = pneg %p28
      %p35 = scmp.eq.s32.totalorder %s19, 1
      %p36 = por %p34, %p35
      %p37 = scmp.ne.s32.totalorder %s29, %s32
      %p38 = scmp.eq.s32.totalorder %s19, 0
      %p39 = por %p37, %p38
      %p40 = scmp.ne.s32.totalorder %s29, %s32
      %p41 = scmp.eq.s32.totalorder %s24, 1
      %p42 = por %p40, %p41
      %p43 = scmp.ne.s32.totalorder %s32, %s33
      %p44 = scmp.eq.s32.totalorder %s24, 0
      %p45 = por %p43, %p44
      %p46 = scmp.ne.s32.totalorder %s32, %s33
      %p47 = scmp.eq.s32.totalorder %s25, 1
      %p48 = por %p46, %p47
      %p50 = scmp.ne.s32.totalorder %s33, %s49
      %p51 = scmp.eq.s32.totalorder %s25, 0
      %p52 = por %p50, %p51
      %s54 = sadd.s32 %s53, 1
      %p57 = scmp.eq.s32.totalorder %s19, 1
      %p58 = scmp.ne.s32.totalorder %s53, %s55
      %p59 = scmp.eq.s32.totalorder %s19, 0
      %p60 = por %p58, %p59
      %p61 = scmp.ne.s32.totalorder %s53, %s55
      %p62 = scmp.eq.s32.totalorder %s24, 1
      %p63 = por %p61, %p62
      %p64 = scmp.ne.s32.totalorder %s55, %s56
      %p65 = scmp.eq.s32.totalorder %s24, 0
      %p66 = por %p64, %p65
      %p67 = scmp.ne.s32.totalorder %s55, %s56
      %p68 = scmp.eq.s32.totalorder %s25, 1
      %p69 = por %p67, %p68
      %p71 = scmp.ne.s32.totalorder %s56, %s70
      %p72 = scmp.eq.s32.totalorder %s25, 0
      %p73 = por %p71, %p72
      %s75 = sadd.s32 %s74, 1
      %p78 = scmp.eq.s32.totalorder %s19, 1
      %p79 = scmp.ne.s32.totalorder %s74, %s76
      %p80 = scmp.eq.s32.totalorder %s19, 0
      %p81 = por %p79, %p80
      %p82 = scmp.ne.s32.totalorder %s74, %s76
      %p83 = scmp.eq.s32.totalorder %s24, 1
      %p84 = por %p82, %p83
      %p85 = scmp.ne.s32.totalorder %s76, %s77
      %p86 = scmp.eq.s32.totalorder %s24, 0
      %p87 = por %p85, %p86
      %p88 = scmp.ne.s32.totalorder %s76, %s77
      %p89 = scmp.eq.s32.totalorder %s25, 1
      %p90 = por %p88, %p89
      %p92 = scmp.ne.s32.totalorder %s77, %s91
      %p93 = scmp.eq.s32.totalorder %s25, 0
      %p94 = por %p92, %p93
      %s96 = sadd.s32 %s95, 1
      %p99 = scmp.eq.s32.totalorder %s19, 1
      %p100 = scmp.ne.s32.totalorder %s95, %s97
      %p101 = scmp.eq.s32.totalorder %s19, 0
      %p102 = por %p100, %p101
      %p103 = scmp.ne.s32.totalorder %s95, %s97
      %p104 = scmp.eq.s32.totalorder %s24, 1
      %p105 = por %p103, %p104
      %p106 = scmp.ne.s32.totalorder %s97, %s98
      %p107 = scmp.eq.s32.totalorder %s24, 0
      %p108 = por %p106, %p107
      %p109 = scmp.ne.s32.totalorder %s97, %s98
      %p110 = scmp.eq.s32.totalorder %s25, 1
      %p111 = por %p109, %p110
      %p113 = scmp.ne.s32.totalorder %s98, %s112
      %p114 = scmp.eq.s32.totalorder %s25, 0
      %p115 = por %p113, %p114
      %s117 = sadd.s32 %s116, 1
      %p120 = scmp.eq.s32.totalorder %s19, 1
      %p121 = scmp.ne.s32.totalorder %s116, %s118
      %p122 = scmp.eq.s32.totalorder %s19, 0
      %p123 = por %p121, %p122
      %p124 = scmp.ne.s32.totalorder %s116, %s118
      %p125 = scmp.eq.s32.totalorder %s24, 1
      %p126 = por %p124, %p125
      %p127 = scmp.ne.s32.totalorder %s118, %s119
      %p128 = scmp.eq.s32.totalorder %s24, 0
      %p129 = por %p127, %p128
      %p130 = scmp.ne.s32.totalorder %s118, %s119
      %p131 = scmp.eq.s32.totalorder %s25, 1
      %p132 = por %p130, %p131
      %p134 = scmp.ne.s32.totalorder %s119, %s133
      %p135 = scmp.eq.s32.totalorder %s25, 0
      %p136 = por %p134, %p135
      %s138 = sadd.s32 %s137, 1
      %p141 = scmp.eq.s32.totalorder %s19, 1
      %p142 = scmp.ne.s32.totalorder %s137, %s139
      %p143 = scmp.eq.s32.totalorder %s19, 0
      %p144 = por %p142, %p143
      %p145 = scmp.ne.s32.totalorder %s137, %s139
      %p146 = scmp.eq.s32.totalorder %s24, 1
      %p147 = por %p145, %p146
      %p148 = scmp.ne.s32.totalorder %s139, %s140
      %p149 = scmp.eq.s32.totalorder %s24, 0
      %p150 = por %p148, %p149
      %p151 = scmp.ne.s32.totalorder %s139, %s140
      %p152 = scmp.eq.s32.totalorder %s25, 1
      %p153 = por %p151, %p152
      %p155 = scmp.ne.s32.totalorder %s140, %s154
      %p156 = scmp.eq.s32.totalorder %s25, 0
      %p157 = por %p155, %p156
      %s159 = sadd.s32 %s158, 1
      %p162 = scmp.eq.s32.totalorder %s19, 1
      %p163 = scmp.ne.s32.totalorder %s158, %s160
      %p164 = scmp.eq.s32.totalorder %s19, 0
      %p165 = por %p163, %p164
      %p166 = scmp.ne.s32.totalorder %s158, %s160
      %p167 = scmp.eq.s32.totalorder %s24, 1
      %p168 = por %p166, %p167
      %p169 = scmp.ne.s32.totalorder %s160, %s161
      %p170 = scmp.eq.s32.totalorder %s24, 0
      %p171 = por %p169, %p170
      %p172 = scmp.ne.s32.totalorder %s160, %s161
      %p173 = scmp.eq.s32.totalorder %s25, 1
      %p174 = por %p172, %p173
      %p176 = scmp.ne.s32.totalorder %s161, %s175
      %p177 = scmp.eq.s32.totalorder %s25, 0
      %p178 = por %p176, %p177
      %s180 = sadd.s32 %s179, 1
      %p183 = scmp.eq.s32.totalorder %s19, 1
      %p184 = scmp.ne.s32.totalorder %s179, %s181
      %p185 = scmp.eq.s32.totalorder %s19, 0
      %p186 = por %p184, %p185
      %p187 = scmp.ne.s32.totalorder %s179, %s181
      %p188 = scmp.eq.s32.totalorder %s24, 1
      %p189 = por %p187, %p188
      %p190 = scmp.ne.s32.totalorder %s181, %s182
      %p191 = scmp.eq.s32.totalorder %s24, 0
      %p192 = por %p190, %p191
      %p193 = scmp.ne.s32.totalorder %s181, %s182
      %p194 = scmp.eq.s32.totalorder %s25, 1
      %p195 = por %p193, %p194
      %p197 = scmp.ne.s32.totalorder %s182, %s196
      %p198 = scmp.eq.s32.totalorder %s25, 0
      %p199 = por %p197, %p198
      %s201 = sadd.s32 %s200, 1
      %p204 = scmp.eq.s32.totalorder %s19, 1
      %p205 = scmp.ne.s32.totalorder %s200, %s202
      %p206 = scmp.eq.s32.totalorder %s19, 0
      %p207 = por %p205, %p206
      %p208 = scmp.ne.s32.totalorder %s200, %s202
      %p209 = scmp.eq.s32.totalorder %s24, 1
      %p210 = por %p208, %p209
      %p211 = scmp.ne.s32.totalorder %s202, %s203
      %p212 = scmp.eq.s32.totalorder %s24, 0
      %p213 = por %p211, %p212
      %p214 = scmp.ne.s32.totalorder %s202, %s203
      %p215 = scmp.eq.s32.totalorder %s25, 1
      %p216 = por %p214, %p215
      %p218 = scmp.ne.s32.totalorder %s203, %s217
      %p219 = scmp.eq.s32.totalorder %s25, 0
      %p220 = por %p218, %p219
      %s221 = ssub.s32 %s19, %s26
      %p222 = scmp.eq.s32.totalorder %s221, 0
      %s224 = sadd.s32 %s223, 1
      %s225 = scalar_select %p222, %s223, %s224
      %p228 = pneg %p222
      %p229 = scmp.eq.s32.totalorder %s19, 1
      %p230 = por %p228, %p229
      %p231 = scmp.ne.s32.totalorder %s223, %s226
      %p232 = scmp.eq.s32.totalorder %s19, 0
      %p233 = por %p231, %p232
      %p234 = scmp.ne.s32.totalorder %s223, %s226
      %p235 = scmp.eq.s32.totalorder %s24, 1
      %p236 = por %p234, %p235
      %p237 = scmp.ne.s32.totalorder %s226, %s227
      %p238 = scmp.eq.s32.totalorder %s24, 0
      %p239 = por %p237, %p238
      %p240 = scmp.ne.s32.totalorder %s226, %s227
      %p241 = scmp.eq.s32.totalorder %s25, 1
      %p242 = por %p240, %p241
      %p244 = scmp.ne.s32.totalorder %s227, %s243
      %p245 = scmp.eq.s32.totalorder %s25, 0
      %p246 = por %p244, %p245
      %p247 = scmp.le.s32.totalorder 1, %s19
      %p248 = scmp.lt.s32.totalorder %s19, 3
      %p249 = pnand %p247, %p248
      %p250 = pneg %p249
      // Predicated region
      $region9: #{statistics_network_forward.1} parent=5 // pred_check
        _
      $region10: #{statistics_network_forward.1} parent=5 // pred_check_branch
        %252 = sbr.rel (%p249) target = $region12
      $region11: #{statistics_network_forward.1} parent=5 // pred_region
        %s253 = ssub.s32 %s19, 1
        // Predicated region
        $region13: #{statistics_network_forward.1} parent=11 // pred_check
          %p254 = pneg %p66
        $region14: #{statistics_network_forward.1} parent=11 // pred_check_branch
          %256 = sbr.rel (%p254) target = $region16
        $region15: #{statistics_network_forward.1} parent=11 // pred_region
          _
        $region16: #{statistics_network_forward.1} parent=11 // pred_fallthru
          _
        // Predicated region
        $region17: #{statistics_network_forward.1} parent=11 // pred_check
          %p257 = pneg %p87
        $region18: #{statistics_network_forward.1} parent=11 // pred_check_branch
          %259 = sbr.rel (%p257) target = $region20
        $region19: #{statistics_network_forward.1} parent=11 // pred_region
          _
        $region20: #{statistics_network_forward.1} parent=11 // pred_fallthru
          _
        // Predicated region
        $region21: #{statistics_network_forward.1} parent=11 // pred_check
          %p260 = pneg %p108
        $region22: #{statistics_network_forward.1} parent=11 // pred_check_branch
          %262 = sbr.rel (%p260) target = $region24
        $region23: #{statistics_network_forward.1} parent=11 // pred_region
          _
        $region24: #{statistics_network_forward.1} parent=11 // pred_fallthru
          _
        // Predicated region
        $region25: #{statistics_network_forward.1} parent=11 // pred_check
          %p263 = pneg %p129
        $region26: #{statistics_network_forward.1} parent=11 // pred_check_branch
          %265 = sbr.rel (%p263) target = $region28
        $region27: #{statistics_network_forward.1} parent=11 // pred_region
          _
        $region28: #{statistics_network_forward.1} parent=11 // pred_fallthru
          _
        // Predicated region
        $region29: #{statistics_network_forward.1} parent=11 // pred_check
          %p266 = pneg %p150
        $region30: #{statistics_network_forward.1} parent=11 // pred_check_branch
          %268 = sbr.rel (%p266) target = $region32
        $region31: #{statistics_network_forward.1} parent=11 // pred_region
          _
        $region32: #{statistics_network_forward.1} parent=11 // pred_fallthru
          _
        // Predicated region
        $region33: #{statistics_network_forward.1} parent=11 // pred_check
          %p269 = pneg %p171
        $region34: #{statistics_network_forward.1} parent=11 // pred_check_branch
          %271 = sbr.rel (%p269) target = $region36
        $region35: #{statistics_network_forward.1} parent=11 // pred_region
          _
        $region36: #{statistics_network_forward.1} parent=11 // pred_fallthru
          _
        // Predicated region
        $region37: #{statistics_network_forward.1} parent=11 // pred_check
          %p272 = pneg %p192
        $region38: #{statistics_network_forward.1} parent=11 // pred_check_branch
          %274 = sbr.rel (%p272) target = $region40
        $region39: #{statistics_network_forward.1} parent=11 // pred_region
          _
        $region40: #{statistics_network_forward.1} parent=11 // pred_fallthru
          _
        // Predicated region
        $region41: #{statistics_network_forward.1} parent=11 // pred_check
          %p275 = pneg %p213
        $region42: #{statistics_network_forward.1} parent=11 // pred_check_branch
          %277 = sbr.rel (%p275) target = $region44
        $region43: #{statistics_network_forward.1} parent=11 // pred_region
          _
        $region44: #{statistics_network_forward.1} parent=11 // pred_fallthru
          _
      $region12: #{statistics_network_forward.1} parent=5 // pred_fallthru
        _
      %p278 = scmp.lt.s32.totalorder %s19, 2
      // Predicated region
      $region45: #{statistics_network_forward.1} parent=5 // pred_check
        %p279 = pneg %p278
      $region46: #{statistics_network_forward.1} parent=5 // pred_check_branch
        %281 = sbr.rel (%p279) target = $region48
      $region47: #{statistics_network_forward.1} parent=5 // pred_region
        // Predicated region
        $region49: #{statistics_network_forward.1} parent=47 // pred_check
          %p282 = pneg %p39
        $region50: #{statistics_network_forward.1} parent=47 // pred_check_branch
          %284 = sbr.rel (%p282) target = $region52
        $region51: #{statistics_network_forward.1} parent=47 // pred_region
          %p285 = scmp.lt.s32.totalorder %s19, 1
          %s286 = scalar_select %p285, %s19, 1
          %s287 = smul.addr %s286, 8
          %s288 = scalar_lea.vmem %s0, %s287
        $region52: #{statistics_network_forward.1} parent=47 // pred_fallthru
          _
      $region48: #{statistics_network_forward.1} parent=5 // pred_fallthru
        _
      %p289 = scmp.le.s32.totalorder 1, %s19
      %p290 = scmp.lt.s32.totalorder %s19, 3
      %p291 = pnand %p289, %p290
      %p292 = pneg %p291
      // Predicated region
      $region53: #{statistics_network_forward.1} parent=5 // pred_check
        _
      $region54: #{statistics_network_forward.1} parent=5 // pred_check_branch
        %294 = sbr.rel (%p291) target = $region56
      $region55: #{statistics_network_forward.1} parent=5 // pred_region
        %s295 = ssub.s32 %s19, 1
        %p296 = scmp.lt.s32.totalorder %s24, 1
        %s297 = scalar_select %p296, %s24, 1
        %s298 = smul.addr %s297, 8
        %s299 = scalar_lea.vmem %s0, %s298
        %p300 = pneg %p45
        %p301 = pneg %p42
        %p302 = pneg %p66
        %p303 = pneg %p63
        %p304 = pneg %p87
        %p305 = pneg %p84
        %p306 = pneg %p108
        %p307 = pneg %p105
        %p308 = pneg %p129
        %p309 = pneg %p126
        %p310 = pneg %p150
        %p311 = pneg %p147
        %p312 = pneg %p171
        %p313 = pneg %p168
        %p314 = pneg %p192
        %p315 = pneg %p189
        %p316 = pneg %p213
        %p317 = pneg %p210
        %p318 = pneg %p239
        %p319 = pneg %p236
        %s320 = sand.u32 %s226, 1
        %s321 = scalar_lea.sflag [#allocation4], %s320
        %s322 = sand.u32 %s226, 1
        %s323 = scalar_lea.vmem [#allocation3], %s322
        %p324 = scmp.lt.s32.totalorder %s24, 1
        %s325 = scalar_select %p324, %s24, 1
        %s326 = smul.addr %s325, 8
        %s327 = scalar_lea.vmem %s0, %s326
        %v328 = vld [vmem:[%s327] sm:$0xff]
        %v329 = vld [vmem:[%s1] sm:$0xff]
        %v330 = vld [vmem:[%s1 + $0x8] sm:$0xff]
        %v331 = vld [vmem:[%s1 + $0x10] sm:$0xff]
        %v332 = vld [vmem:[%s1 + $0x18] sm:$0xff]
        %v333 = vld [vmem:[%s2] sm:$0xff]
        %v334 = vld [vmem:[%s2 + $0x8] sm:$0xff]
        %v335 = vld [vmem:[%s2 + $0x10] sm:$0xff]
        %v336 = vld [vmem:[%s2 + $0x18] sm:$0xff]
        %338 = vset.pattern.permute.xlu0 0
        %339 = vperm.xlu0 %338, %v333
        %v340 = vpop.permute.xlu0 %339
        %343 = vset.pattern.permute.xlu0 0
        %344 = vperm.xlu0 %343, %v334
        %v345 = vpop.permute.xlu0 %344
        %348 = vset.pattern.permute.xlu0 0
        %349 = vperm.xlu0 %348, %v335
        %v350 = vpop.permute.xlu0 %349
        %353 = vset.pattern.permute.xlu0 0
        %354 = vperm.xlu0 %353, %v336
        %v355 = vpop.permute.xlu0 %354
        %vm357 = vcmask 64512
        %v359 = vsel %vm357, %v329, 0
        %v362 = vsel %vm357, %v330, 0
        %v365 = vsel %vm357, %v331, 0
        %v368 = vsel %vm357, %v332, 0
        %370 = vmatprep.subr.mxu0 0.0
        %371 = vmatpush1.msra.mxu0 %v328
        %372 = vmatprep.subr.mxu0 0.0
        %373 = vmatpush1.msra.mxu0 0.0
        %374 = vmatprep.subr.mxu0 0.0
        %375 = vmatpush1.msra.mxu0 0.0
        %376 = vmatprep.subr.mxu0 0.0
        %377 = vmatpush1.msra.mxu0 0.0
        %378 = vmatprep.subr.mxu0 0.0
        %379 = vmatpush1.msra.mxu0 0.0
        %380 = vmatprep.subr.mxu0 0.0
        %381 = vmatpush1.msra.mxu0 0.0
        %382 = vmatprep.subr.mxu0 0.0
        %383 = vmatpush1.msra.mxu0 0.0
        %384 = vmatprep.subr.mxu0 0.0
        %385 = vmatpush1.msra.mxu0 0.0
        %386 = vmatprep.subr.mxu0 0.0
        %387 = vmatpush1.msra.mxu0 0.0
        %388 = vmatprep.subr.mxu0 0.0
        %389 = vmatpush1.msra.mxu0 0.0
        %390 = vmatprep.subr.mxu0 0.0
        %391 = vmatpush1.msra.mxu0 0.0
        %392 = vmatprep.subr.mxu0 0.0
        %393 = vmatpush1.msra.mxu0 0.0
        %394 = vmatprep.subr.mxu0 0.0
        %395 = vmatpush1.msra.mxu0 0.0
        %396 = vmatprep.subr.mxu0 0.0
        %397 = vmatpush1.msra.mxu0 0.0
        %398 = vmatprep.subr.mxu0 0.0
        %399 = vmatpush1.msra.mxu0 0.0
        %400 = vmatprep.subr.mxu0 0.0
        %401 = vmatpush1.msra.mxu0 0.0
        %402 = vmatprep.subr.mxu0 0.0
        %403 = vmatpush1.msra.mxu0 0.0
        %404 = vmatprep.subr.mxu0 0.0
        %405 = vmatpush1.msra.mxu0 0.0
        %406 = vmatprep.subr.mxu0 0.0
        %407 = vmatpush1.msra.mxu0 0.0
        %408 = vmatprep.subr.mxu0 0.0
        %409 = vmatpush1.msra.mxu0 0.0
        %410 = vmatprep.subr.mxu0 0.0
        %411 = vmatpush1.msra.mxu0 0.0
        %412 = vmatprep.subr.mxu0 0.0
        %413 = vmatpush1.msra.mxu0 0.0
        %414 = vmatprep.subr.mxu0 0.0
        %415 = vmatpush1.msra.mxu0 0.0
        %416 = vmatprep.subr.mxu0 0.0
        %417 = vmatpush1.msra.mxu0 0.0
        %418 = vmatprep.subr.mxu0 0.0
        %419 = vmatpush1.msra.mxu0 0.0
        %420 = vmatprep.subr.mxu0 0.0
        %421 = vmatpush1.msra.mxu0 0.0
        %422 = vmatprep.subr.mxu0 0.0
        %423 = vmatpush1.msra.mxu0 0.0
        %424 = vmatprep.subr.mxu0 0.0
        %425 = vmatpush1.msra.mxu0 0.0
        %426 = vmatprep.subr.mxu0 0.0
        %427 = vmatpush1.msra.mxu0 0.0
        %428 = vmatprep.subr.mxu0 0.0
        %429 = vmatpush1.msra.mxu0 0.0
        %430 = vmatprep.subr.mxu0 0.0
        %431 = vmatpush1.msra.mxu0 0.0
        %432 = vmatprep.subr.mxu0 0.0
        %433 = vmatpush1.msra.mxu0 0.0
        %434 = vmatprep.mubr.f32.mxu0 0.0
        %435 = vmatmul.mubr.f32.gmra.mrb[0].mxu0 %v359
        %v436 = vpop.f32.mrb[0].mxu0
        %v437 = vadd.f32 %v340, %v436
        %v438 = vpop.f32.mrb[0].mxu0
        %439 = vmatprep.mubr.f32.mxu0 0.0
        %440 = vmatmul.mubr.f32.gmra.mrb[0].mxu0 %v362
        %v441 = vpop.f32.mrb[0].mxu0
        %v442 = vadd.f32 %v345, %v441
        %v443 = vpop.f32.mrb[0].mxu0
        %444 = vmatprep.mubr.f32.mxu0 0.0
        %445 = vmatmul.mubr.f32.gmra.mrb[0].mxu0 %v365
        %v446 = vpop.f32.mrb[0].mxu0
        %v447 = vadd.f32 %v350, %v446
        %v448 = vpop.f32.mrb[0].mxu0
        %449 = vmatprep.mubr.f32.mxu0 0.0
        %450 = vmatmul.mubr.f32.gmra.mrb[0].mxu0 %v368
        %v451 = vpop.f32.mrb[0].mxu0
        %v452 = vadd.f32 %v355, %v451
        %v453 = vpop.f32.mrb[0].mxu0
        %454 = vdwg.mxu0
        %vm455 = vcmp.ge.f32.partialorder %v437, 0.0
        %vm456 = vcmp.ge.f32.partialorder %v442, 0.0
        %vm457 = vcmp.ge.f32.partialorder %v447, 0.0
        %vm458 = vcmp.ge.f32.partialorder %v452, 0.0
        %v459 = vmul.f32 %v437, 0.2
        %v460 = vmul.f32 %v442, 0.2
        %v461 = vmul.f32 %v447, 0.2
        %v462 = vmul.f32 %v452, 0.2
        %v463 = vsel %vm455, %v437, %v459
        %v464 = vsel %vm456, %v442, %v460
        %v465 = vsel %vm457, %v447, %v461
        %v466 = vsel %vm458, %v452, %v462
        %v467 = vld [vmem:[%s3] sm:$0xff]
        %v468 = vld [vmem:[%s3 + $0x8] sm:$0xff]
        %v469 = vld [vmem:[%s3 + $0x10] sm:$0xff]
        %v470 = vld [vmem:[%s3 + $0x18] sm:$0xff]
        %v471 = vld [vmem:[%s4] sm:$0xff]
        %v472 = vld [vmem:[%s4 + $0x8] sm:$0xff]
        %v473 = vld [vmem:[%s4 + $0x10] sm:$0xff]
        %v474 = vld [vmem:[%s4 + $0x18] sm:$0xff]
        %476 = vset.pattern.permute.xlu0 0
        %477 = vperm.xlu0 %476, %v471
        %v478 = vpop.permute.xlu0 %477
        %481 = vset.pattern.permute.xlu0 0
        %482 = vperm.xlu0 %481, %v472
        %v483 = vpop.permute.xlu0 %482
        %486 = vset.pattern.permute.xlu0 0
        %487 = vperm.xlu0 %486, %v473
        %v488 = vpop.permute.xlu0 %487
        %491 = vset.pattern.permute.xlu0 0
        %492 = vperm.xlu0 %491, %v474
        %v493 = vpop.permute.xlu0 %492
        %vm495 = vcmask 261120
        %v497 = vsel %vm495, %v467, 0
        %v500 = vsel %vm495, %v468, 0
        %v503 = vsel %vm495, %v469, 0
        %v506 = vsel %vm495, %v470, 0
        %508 = vmatprep.subr.mxu0 0.0
        %509 = vmatpush1.msra.mxu0 %v463
        %510 = vmatprep.subr.mxu0 0.0
        %511 = vmatpush1.msra.mxu0 %v464
        %512 = vmatprep.subr.mxu0 0.0
        %513 = vmatpush1.msra.mxu0 %v465
        %514 = vmatprep.subr.mxu0 0.0
        %515 = vmatpush1.msra.mxu0 %v466
        %516 = vmatprep.subr.mxu0 0.0
        %517 = vmatpush1.msra.mxu0 0.0
        %518 = vmatprep.subr.mxu0 0.0
        %519 = vmatpush1.msra.mxu0 0.0
        %520 = vmatprep.subr.mxu0 0.0
        %521 = vmatpush1.msra.mxu0 0.0
        %522 = vmatprep.subr.mxu0 0.0
        %523 = vmatpush1.msra.mxu0 0.0
        %524 = vmatprep.subr.mxu0 0.0
        %525 = vmatpush1.msra.mxu0 0.0
        %526 = vmatprep.subr.mxu0 0.0
        %527 = vmatpush1.msra.mxu0 0.0
        %528 = vmatprep.subr.mxu0 0.0
        %529 = vmatpush1.msra.mxu0 0.0
        %530 = vmatprep.subr.mxu0 0.0
        %531 = vmatpush1.msra.mxu0 0.0
        %532 = vmatprep.subr.mxu0 0.0
        %533 = vmatpush1.msra.mxu0 0.0
        %534 = vmatprep.subr.mxu0 0.0
        %535 = vmatpush1.msra.mxu0 0.0
        %536 = vmatprep.subr.mxu0 0.0
        %537 = vmatpush1.msra.mxu0 0.0
        %538 = vmatprep.subr.mxu0 0.0
        %539 = vmatpush1.msra.mxu0 0.0
        %540 = vmatprep.subr.mxu0 0.0
        %541 = vmatpush1.msra.mxu0 0.0
        %542 = vmatprep.subr.mxu0 0.0
        %543 = vmatpush1.msra.mxu0 0.0
        %544 = vmatprep.subr.mxu0 0.0
        %545 = vmatpush1.msra.mxu0 0.0
        %546 = vmatprep.subr.mxu0 0.0
        %547 = vmatpush1.msra.mxu0 0.0
        %548 = vmatprep.subr.mxu0 0.0
        %549 = vmatpush1.msra.mxu0 0.0
        %550 = vmatprep.subr.mxu0 0.0
        %551 = vmatpush1.msra.mxu0 0.0
        %552 = vmatprep.subr.mxu0 0.0
        %553 = vmatpush1.msra.mxu0 0.0
        %554 = vmatprep.subr.mxu0 0.0
        %555 = vmatpush1.msra.mxu0 0.0
        %556 = vmatprep.subr.mxu0 0.0
        %557 = vmatpush1.msra.mxu0 0.0
        %558 = vmatprep.subr.mxu0 0.0
        %559 = vmatpush1.msra.mxu0 0.0
        %560 = vmatprep.subr.mxu0 0.0
        %561 = vmatpush1.msra.mxu0 0.0
        %562 = vmatprep.subr.mxu0 0.0
        %563 = vmatpush1.msra.mxu0 0.0
        %564 = vmatprep.subr.mxu0 0.0
        %565 = vmatpush1.msra.mxu0 0.0
        %566 = vmatprep.subr.mxu0 0.0
        %567 = vmatpush1.msra.mxu0 0.0
        %568 = vmatprep.subr.mxu0 0.0
        %569 = vmatpush1.msra.mxu0 0.0
        %570 = vmatprep.subr.mxu0 0.0
        %571 = vmatpush1.msra.mxu0 0.0
        %572 = vmatprep.mubr.f32.mxu0 0.0
        %573 = vmatmul.mubr.f32.gmra.mrb[0].mxu0 %v497
        %v574 = vpop.f32.mrb[0].mxu0
        %v575 = vadd.f32 %v478, %v574
        %v576 = vpop.f32.mrb[0].mxu0
        %577 = vmatprep.mubr.f32.mxu0 0.0
        %578 = vmatmul.mubr.f32.gmra.mrb[0].mxu0 %v500
        %v579 = vpop.f32.mrb[0].mxu0
        %v580 = vadd.f32 %v483, %v579
        %v581 = vpop.f32.mrb[0].mxu0
        %582 = vmatprep.mubr.f32.mxu0 0.0
        %583 = vmatmul.mubr.f32.gmra.mrb[0].mxu0 %v503
        %v584 = vpop.f32.mrb[0].mxu0
        %v585 = vadd.f32 %v488, %v584
        %v586 = vpop.f32.mrb[0].mxu0
        %587 = vmatprep.mubr.f32.mxu0 0.0
        %588 = vmatmul.mubr.f32.gmra.mrb[0].mxu0 %v506
        %v589 = vpop.f32.mrb[0].mxu0
        %v590 = vadd.f32 %v493, %v589
        %v591 = vpop.f32.mrb[0].mxu0
        %592 = vdwg.mxu0
        %vm593 = vcmp.ge.f32.partialorder %v575, 0.0
        %vm594 = vcmp.ge.f32.partialorder %v580, 0.0
        %vm595 = vcmp.ge.f32.partialorder %v585, 0.0
        %vm596 = vcmp.ge.f32.partialorder %v590, 0.0
        %v597 = vmul.f32 %v575, 0.2
        %v598 = vmul.f32 %v580, 0.2
        %v599 = vmul.f32 %v585, 0.2
        %v600 = vmul.f32 %v590, 0.2
        %v601 = vsel %vm593, %v575, %v597
        %v602 = vsel %vm594, %v580, %v598
        %v603 = vsel %vm595, %v585, %v599
        %v604 = vsel %vm596, %v590, %v600
        %v605 = vld [vmem:[%s5] sm:$0xff]
        %v606 = vld [vmem:[%s5 + $0x8] sm:$0xff]
        %v607 = vld [vmem:[%s5 + $0x10] sm:$0xff]
        %v608 = vld [vmem:[%s5 + $0x18] sm:$0xff]
        %v609 = vld [vmem:[%s6] sm:$0xff]
        %v610 = vld [vmem:[%s6 + $0x8] sm:$0xff]
        %v611 = vld [vmem:[%s6 + $0x10] sm:$0xff]
        %v612 = vld [vmem:[%s6 + $0x18] sm:$0xff]
        %614 = vset.pattern.permute.xlu0 0
        %615 = vperm.xlu0 %614, %v609
        %v616 = vpop.permute.xlu0 %615
        %619 = vset.pattern.permute.xlu0 0
        %620 = vperm.xlu0 %619, %v610
        %v621 = vpop.permute.xlu0 %620
        %624 = vset.pattern.permute.xlu0 0
        %625 = vperm.xlu0 %624, %v611
        %v626 = vpop.permute.xlu0 %625
        %629 = vset.pattern.permute.xlu0 0
        %630 = vperm.xlu0 %629, %v612
        %v631 = vpop.permute.xlu0 %630
        %v634 = vsel %vm495, %v605, 0
        %v637 = vsel %vm495, %v606, 0
        %v640 = vsel %vm495, %v607, 0
        %v643 = vsel %vm495, %v608, 0
        %645 = vmatprep.subr.mxu0 0.0
        %646 = vmatpush1.msra.mxu0 %v601
        %647 = vmatprep.subr.mxu0 0.0
        %648 = vmatpush1.msra.mxu0 %v602
        %649 = vmatprep.subr.mxu0 0.0
        %650 = vmatpush1.msra.mxu0 %v603
        %651 = vmatprep.subr.mxu0 0.0
        %652 = vmatpush1.msra.mxu0 %v604
        %653 = vmatprep.subr.mxu0 0.0
        %654 = vmatpush1.msra.mxu0 0.0
        %655 = vmatprep.subr.mxu0 0.0
        %656 = vmatpush1.msra.mxu0 0.0
        %657 = vmatprep.subr.mxu0 0.0
        %658 = vmatpush1.msra.mxu0 0.0
        %659 = vmatprep.subr.mxu0 0.0
        %660 = vmatpush1.msra.mxu0 0.0
        %661 = vmatprep.subr.mxu0 0.0
        %662 = vmatpush1.msra.mxu0 0.0
        %663 = vmatprep.subr.mxu0 0.0
        %664 = vmatpush1.msra.mxu0 0.0
        %665 = vmatprep.subr.mxu0 0.0
        %666 = vmatpush1.msra.mxu0 0.0
        %667 = vmatprep.subr.mxu0 0.0
        %668 = vmatpush1.msra.mxu0 0.0
        %669 = vmatprep.subr.mxu0 0.0
        %670 = vmatpush1.msra.mxu0 0.0
        %671 = vmatprep.subr.mxu0 0.0
        %672 = vmatpush1.msra.mxu0 0.0
        %673 = vmatprep.subr.mxu0 0.0
        %674 = vmatpush1.msra.mxu0 0.0
        %675 = vmatprep.subr.mxu0 0.0
        %676 = vmatpush1.msra.mxu0 0.0
        %677 = vmatprep.subr.mxu0 0.0
        %678 = vmatpush1.msra.mxu0 0.0
        %679 = vmatprep.subr.mxu0 0.0
        %680 = vmatpush1.msra.mxu0 0.0
        %681 = vmatprep.subr.mxu0 0.0
        %682 = vmatpush1.msra.mxu0 0.0
        %683 = vmatprep.subr.mxu0 0.0
        %684 = vmatpush1.msra.mxu0 0.0
        %685 = vmatprep.subr.mxu0 0.0
        %686 = vmatpush1.msra.mxu0 0.0
        %687 = vmatprep.subr.mxu0 0.0
        %688 = vmatpush1.msra.mxu0 0.0
        %689 = vmatprep.subr.mxu0 0.0
        %690 = vmatpush1.msra.mxu0 0.0
        %691 = vmatprep.subr.mxu0 0.0
        %692 = vmatpush1.msra.mxu0 0.0
        %693 = vmatprep.subr.mxu0 0.0
        %694 = vmatpush1.msra.mxu0 0.0
        %695 = vmatprep.subr.mxu0 0.0
        %696 = vmatpush1.msra.mxu0 0.0
        %697 = vmatprep.subr.mxu0 0.0
        %698 = vmatpush1.msra.mxu0 0.0
        %699 = vmatprep.subr.mxu0 0.0
        %700 = vmatpush1.msra.mxu0 0.0
        %701 = vmatprep.subr.mxu0 0.0
        %702 = vmatpush1.msra.mxu0 0.0
        %703 = vmatprep.subr.mxu0 0.0
        %704 = vmatpush1.msra.mxu0 0.0
        %705 = vmatprep.subr.mxu0 0.0
        %706 = vmatpush1.msra.mxu0 0.0
        %707 = vmatprep.subr.mxu0 0.0
        %708 = vmatpush1.msra.mxu0 0.0
        %709 = vmatprep.mubr.f32.mxu0 0.0
        %710 = vmatmul.mubr.f32.gmra.mrb[0].mxu0 %v634
        %v711 = vpop.f32.mrb[0].mxu0
        %v712 = vadd.f32 %v616, %v711
        %v713 = vpop.f32.mrb[0].mxu0
        %714 = vmatprep.mubr.f32.mxu0 0.0
        %715 = vmatmul.mubr.f32.gmra.mrb[0].mxu0 %v637
        %v716 = vpop.f32.mrb[0].mxu0
        %v717 = vadd.f32 %v621, %v716
        %v718 = vpop.f32.mrb[0].mxu0
        %719 = vmatprep.mubr.f32.mxu0 0.0
        %720 = vmatmul.mubr.f32.gmra.mrb[0].mxu0 %v640
        %v721 = vpop.f32.mrb[0].mxu0
        %v722 = vadd.f32 %v626, %v721
        %v723 = vpop.f32.mrb[0].mxu0
        %724 = vmatprep.mubr.f32.mxu0 0.0
        %725 = vmatmul.mubr.f32.gmra.mrb[0].mxu0 %v643
        %v726 = vpop.f32.mrb[0].mxu0
        %v727 = vadd.f32 %v631, %v726
        %v728 = vpop.f32.mrb[0].mxu0
        %729 = vdwg.mxu0
        %vm730 = vcmp.ge.f32.partialorder %v712, 0.0
        %vm731 = vcmp.ge.f32.partialorder %v717, 0.0
        %vm732 = vcmp.ge.f32.partialorder %v722, 0.0
        %vm733 = vcmp.ge.f32.partialorder %v727, 0.0
        %v734 = vmul.f32 %v712, 0.2
        %v735 = vmul.f32 %v717, 0.2
        %v736 = vmul.f32 %v722, 0.2
        %v737 = vmul.f32 %v727, 0.2
        %v738 = vsel %vm730, %v712, %v734
        %v739 = vsel %vm731, %v717, %v735
        %v740 = vsel %vm732, %v722, %v736
        %v741 = vsel %vm733, %v727, %v737
        %v742 = vld [vmem:[%s7] sm:$0x1]
        %s743 = sld [smem:[#allocation2]]
        %v744 = vstv %s743
        %v746 = vsel %vm495, %v742, 0
        %748 = vmatprep.subr.mxu0 0.0
        %749 = vmatpush1.msra.mxu0 %v738
        %750 = vmatprep.subr.mxu0 0.0
        %751 = vmatpush1.msra.mxu0 %v739
        %752 = vmatprep.subr.mxu0 0.0
        %753 = vmatpush1.msra.mxu0 %v740
        %754 = vmatprep.subr.mxu0 0.0
        %755 = vmatpush1.msra.mxu0 %v741
        %756 = vmatprep.subr.mxu0 0.0
        %757 = vmatpush1.msra.mxu0 0.0
        %758 = vmatprep.subr.mxu0 0.0
        %759 = vmatpush1.msra.mxu0 0.0
        %760 = vmatprep.subr.mxu0 0.0
        %761 = vmatpush1.msra.mxu0 0.0
        %762 = vmatprep.subr.mxu0 0.0
        %763 = vmatpush1.msra.mxu0 0.0
        %764 = vmatprep.subr.mxu0 0.0
        %765 = vmatpush1.msra.mxu0 0.0
        %766 = vmatprep.subr.mxu0 0.0
        %767 = vmatpush1.msra.mxu0 0.0
        %768 = vmatprep.subr.mxu0 0.0
        %769 = vmatpush1.msra.mxu0 0.0
        %770 = vmatprep.subr.mxu0 0.0
        %771 = vmatpush1.msra.mxu0 0.0
        %772 = vmatprep.subr.mxu0 0.0
        %773 = vmatpush1.msra.mxu0 0.0
        %774 = vmatprep.subr.mxu0 0.0
        %775 = vmatpush1.msra.mxu0 0.0
        %776 = vmatprep.subr.mxu0 0.0
        %777 = vmatpush1.msra.mxu0 0.0
        %778 = vmatprep.subr.mxu0 0.0
        %779 = vmatpush1.msra.mxu0 0.0
        %780 = vmatprep.subr.mxu0 0.0
        %781 = vmatpush1.msra.mxu0 0.0
        %782 = vmatprep.subr.mxu0 0.0
        %783 = vmatpush1.msra.mxu0 0.0
        %784 = vmatprep.subr.mxu0 0.0
        %785 = vmatpush1.msra.mxu0 0.0
        %786 = vmatprep.subr.mxu0 0.0
        %787 = vmatpush1.msra.mxu0 0.0
        %788 = vmatprep.subr.mxu0 0.0
        %789 = vmatpush1.msra.mxu0 0.0
        %790 = vmatprep.subr.mxu0 0.0
        %791 = vmatpush1.msra.mxu0 0.0
        %792 = vmatprep.subr.mxu0 0.0
        %793 = vmatpush1.msra.mxu0 0.0
        %794 = vmatprep.subr.mxu0 0.0
        %795 = vmatpush1.msra.mxu0 0.0
        %796 = vmatprep.subr.mxu0 0.0
        %797 = vmatpush1.msra.mxu0 0.0
        %798 = vmatprep.subr.mxu0 0.0
        %799 = vmatpush1.msra.mxu0 0.0
        %800 = vmatprep.subr.mxu0 0.0
        %801 = vmatpush1.msra.mxu0 0.0
        %802 = vmatprep.subr.mxu0 0.0
        %803 = vmatpush1.msra.mxu0 0.0
        %804 = vmatprep.subr.mxu0 0.0
        %805 = vmatpush1.msra.mxu0 0.0
        %806 = vmatprep.subr.mxu0 0.0
        %807 = vmatpush1.msra.mxu0 0.0
        %808 = vmatprep.subr.mxu0 0.0
        %809 = vmatpush1.msra.mxu0 0.0
        %810 = vmatprep.subr.mxu0 0.0
        %811 = vmatpush1.msra.mxu0 0.0
        %812 = vmatprep.mubr.f32.mxu0 0.0
        %813 = vmatmul.mubr.f32.gmra.mrb[0].mxu0 %v746
        %v814 = vpop.f32.mrb[0].mxu0
        %v815 = vadd.f32 %v744, %v814
        %v816 = vpop.f32.mrb[0].mxu0
        %817 = vdwg.mxu0
        %818 = vst [vmem:[%s323] sm:$0x1] %v815
        %s819 = sand.u32 %s226, 1
        %s820 = scalar_lea.sflag [#allocation4], %s819
        %s821 = sand.u32 %s226, 1
        %s822 = scalar_lea.vmem [#allocation3], %s821
        // Predicated region
        $region57: #{statistics_network_forward.1} parent=55 // pred_check
          %p823 = pneg %p236
        $region58: #{statistics_network_forward.1} parent=55 // pred_check_branch
          %825 = sbr.rel (%p823) target = $region60
        $region59: #{statistics_network_forward.1} parent=55 // pred_region
          %s827 = ssub.s32 16, 16
          %828 = vsyncadd %s820, %s827
          %s829 = smul.addr %s24, 16
          %s830 = scalar_lea.hbm %s9, %s829
          %s832 = sshll.u32 %s822, 4
          %s833 = int_to_ptr.vmem [resolvable:$true] %s832
          %835 = dma.vmem_to_hbm [thread:$0]  %s833, 16, %s830, %s820
        $region60: #{statistics_network_forward.1} parent=55 // pred_fallthru
          _
      $region56: #{statistics_network_forward.1} parent=5 // pred_fallthru
        _
      %p836 = scmp.le.s32.totalorder 2, %s19
      // Predicated region
      $region61: #{statistics_network_forward.1} parent=5 // pred_check
        %p837 = pneg %p836
      $region62: #{statistics_network_forward.1} parent=5 // pred_check_branch
        %839 = sbr.rel (%p837) target = $region64
      $region63: #{statistics_network_forward.1} parent=5 // pred_region
        %s840 = ssub.s32 %s19, 2
        // Predicated region
        $region65: #{statistics_network_forward.1} parent=63 // pred_check
          %p841 = pneg %p242
        $region66: #{statistics_network_forward.1} parent=63 // pred_check_branch
          %843 = sbr.rel (%p841) target = $region68
        $region67: #{statistics_network_forward.1} parent=63 // pred_region
          %s844 = sand.u32 %s227, 1
          %s845 = scalar_lea.sflag [#allocation4], %s844
          %s846 = sand.u32 %s227, 1
          %s847 = scalar_lea.vmem [#allocation3], %s846
          %848 = dma.done %s845, 16
        $region68: #{statistics_network_forward.1} parent=63 // pred_fallthru
          _
      $region64: #{statistics_network_forward.1} parent=5 // pred_fallthru
        _
    $region6: #{statistics_network_forward.1} parent=1 // loop_footer
      %s23 = sadd.s32 1, %s19
    $region7: #{statistics_network_forward.1} parent=1 // loop_footer_branch
      %18 = sbr.rel target = $region3
    $region8: #{statistics_network_forward.1} parent=1 // loop_exit
      _
    %849 = vsyncpa [#allocation4], 1
    %s850 = scalar_lea.sflag [#allocation4], 1
    %851 = vsyncpa %s850, 1

</llo_original>
